<compile_context>
chip_gen: v5e
topology: v5e:2x2
jax: 0.10.0
libtpu: 0.0.40
codegen_flags: <defaults>
</compile_context>

<pallas_src>
import functools

import jax
import jax.numpy as jnp
from jax import lax
from jax.experimental import pallas as pl
from jax.experimental.pallas import tpu as pltpu


def _residual_layer_kernel(x_ref, wprev_ref, wcur_ref, wrs_ref,
                           res_ref, skip_ref, carry_ref, *,
                           C, dilation, shift, t_tile, num_time_tiles,
                           compute_dtype):
    # x_ref     : (1, C, t_tile)   current time tile of x (NCT; T on lanes)
    # wprev_ref : (2C, C)          [Wf; Wg] tap applied to x[t - d]
    # wcur_ref  : (2C, C)          [Wf; Wg] tap applied to x[t]
    # wrs_ref   : (C + Cskip, C)   [Wres; Wskip]
    # carry_ref : (C, shift) VMEM scratch — last `shift` columns of the
    #             previous time tile of the same batch row (time axis is
    #             sequential, so the carry is valid when it is consumed).
    t = pl.program_id(1)

    @pl.when(t == 0)
    def _():
        # First time tile of this batch row: the halo would come from t < 0.
        # Zero it (those output columns are additionally masked below).
        carry_ref[...] = jnp.zeros_like(carry_ref)

    xcur = x_ref[0]                                     # (C, tT), input dtype

    # x[t - d] for every column of this tile, with zero extra HBM traffic:
    # `shift` carried columns from the previous tile followed by the first
    # (t_tile - shift) columns of this tile.
    if shift == t_tile:
        xprev = carry_ref[...]
    else:
        xprev = jnp.concatenate(
            [carry_ref[...], xcur[:, :t_tile - shift]], axis=1)
    if num_time_tiles > 1:
        # Carry for the next time tile of this batch row.
        carry_ref[...] = xcur[:, t_tile - shift:]

    xcur_c = xcur.astype(compute_dtype)
    xprev_c = xprev.astype(compute_dtype)

    # Fused dilated causal conv (kernel_size=2): two K=C MXU matmuls with f32
    # accumulation (no (2C, t_tile) stacked-activation buffer).
    fg = (jnp.dot(wprev_ref[...], xprev_c, preferred_element_type=jnp.float32)
          + jnp.dot(wcur_ref[...], xcur_c, preferred_element_type=jnp.float32))
    f = fg[:C]
    g = fg[C:]

    # Gated activation: tanh(f) * sigmoid(g).  sigmoid via exp + EUP approx
    # reciprocal; exp(-g) -> +inf for very negative g gives recip(inf) = 0,
    # which is the correct sigmoid limit (benign, not a NaN path).
    gate = pl.reciprocal(1.0 + jnp.exp(-g), approx=True)
    z = jnp.tanh(f) * gate

    # PyTorch pads the conv OUTPUT with zeros, so z[t] = 0 for global t < d.
    gt = t * t_tile + lax.broadcasted_iota(jnp.int32, (1, t_tile), 1)
    z = jnp.where(gt >= dilation, z, 0.0)

    # Fused 1x1 convs: one matmul producing [res_delta; skip].
    out = jnp.dot(wrs_ref[...], z.astype(compute_dtype),
                  preferred_element_type=jnp.float32)   # (C + Cskip, tT)
    res_ref[0] = (xcur.astype(jnp.float32) + out[:C]).astype(res_ref.dtype)
    skip_ref[0] = out[C:].astype(skip_ref.dtype)


def residual_layer_forward(x_nct, wf, wg, wres, wskip, dilation, *,
                           compute_dtype=jnp.bfloat16,
                           out_dtype=jnp.float32,
                           t_tile=None):
    """x_nct: (B, C, T) (PyTorch NCT layout); wf/wg: (C, C, 2);
    wres: (C, C, 1); wskip: (Cskip, C, 1).
    Returns (res (B, C, T), skip (B, Cskip, T)) in `out_dtype`."""
    B, C, T = x_nct.shape
    Cskip = wskip.shape[0]
    d = int(dilation)
    assert d >= 1, "Conv1d dilation must be >= 1"

    # ---- fused weights (tiny, prepared once in XLA) ----
    # PyTorch cross-correlation + output-side left pad of d means, for t >= d:
    #   y[t] = W[:, :, 0] @ x[t - d] + W[:, :, 1] @ x[t]
    w_prev = jnp.concatenate([wf[:, :, 0], wg[:, :, 0]],
                             axis=0).astype(compute_dtype)      # (2C, C)
    w_cur = jnp.concatenate([wf[:, :, 1], wg[:, :, 1]],
                            axis=0).astype(compute_dtype)       # (2C, C)
    w_rs = jnp.concatenate([wres[:, :, 0], wskip[:, :, 0]],
                           axis=0).astype(compute_dtype)        # (C+Cskip, C)

    # ---- time tiling: lane-dense, as large as comfortably fits VMEM ----
    if t_tile is None:
        cands = [c for c in (16384, 8192, 4096, 2048, 1024, 512, 256, 128)
                 if T % c == 0 and (c >= d or d >= T)]
        t_tile = T
        for c in cands:
            # Keep >= 2 grid steps when possible so v7x's two TensorCores both
            # get work (the parallel batch axis usually provides this).
            if B * (T // c) >= 2:
                t_tile = c
                break
        else:
            if cands:
                t_tile = cands[0]
    assert T % t_tile == 0, "t_tile must divide T"
    nT = T // t_tile
    # The carried halo only reaches back into the directly preceding tile
    # (or every t < d column is masked anyway).
    assert nT == 1 or t_tile >= d or d >= T, \
        "choose t_tile >= dilation (or a single time tile)"
    shift = min(d, t_tile)

    kernel = functools.partial(
        _residual_layer_kernel, C=C, dilation=d, shift=shift,
        t_tile=t_tile, num_time_tiles=nT, compute_dtype=compute_dtype)

    res, skip = pl.pallas_call(
        kernel,
        out_shape=(jax.ShapeDtypeStruct((B, C, T), out_dtype),
                   jax.ShapeDtypeStruct((B, Cskip, T), out_dtype)),
        grid_spec=pltpu.PrefetchScalarGridSpec(
            num_scalar_prefetch=0,
            grid=(B, nT),
            in_specs=[
                pl.BlockSpec((1, C, t_tile), lambda b, t: (b, 0, t)),   # x
                pl.BlockSpec((2 * C, C), lambda b, t: (0, 0)),          # tap x[t-d]
                pl.BlockSpec((2 * C, C), lambda b, t: (0, 0)),          # tap x[t]
                pl.BlockSpec((C + Cskip, C), lambda b, t: (0, 0)),      # [Wres;Wskip]
            ],
            out_specs=[
                pl.BlockSpec((1, C, t_tile), lambda b, t: (b, 0, t)),
                pl.BlockSpec((1, Cskip, t_tile), lambda b, t: (b, 0, t)),
            ],
            scratch_shapes=[pltpu.VMEM((C, shift), x_nct.dtype)],
        ),
        compiler_params=pltpu.CompilerParams(
            # Batch rows are independent -> "parallel" (megacore on v7x).
            # The time axis carries the dilated-conv halo between consecutive
            # tiles, so it must run sequentially on one core -> "arbitrary".
            dimension_semantics=("parallel", "arbitrary"),
            vmem_limit_bytes=(48 * 1024 * 1024 if t_tile >= 4096 else None)),
    )(x_nct, w_prev, w_cur, w_rs)

    return res, skip


def residual_layer_reference(x_nct, wf, wg, wres, wskip, dilation):
    """Pure-JAX f32 reference mirroring the PyTorch module (NCT layout)."""
    dn = ("NCH", "OIH", "NCH")
    f = lax.conv_general_dilated(x_nct, wf, window_strides=(1,),
                                 padding="VALID", rhs_dilation=(dilation,),
                                 dimension_numbers=dn)
    g = lax.conv_general_dilated(x_nct, wg, window_strides=(1,),
                                 padding="VALID", rhs_dilation=(dilation,),
                                 dimension_numbers=dn)
    f = jnp.pad(f, ((0, 0), (0, 0), (dilation, 0)))
    g = jnp.pad(g, ((0, 0), (0, 0), (dilation, 0)))
    z = jnp.tanh(f) * jax.nn.sigmoid(g)
    res = x_nct + jnp.einsum("oc,bct->bot", wres[:, :, 0], z)
    skip = jnp.einsum("oc,bct->bot", wskip[:, :, 0], z)
    return res, skip


if __name__ == "__main__":
    B, res_channels, skip_channels, T, dilation = 2, 16, 32, 32, 2

    key = jax.random.PRNGKey(0)
    kx, kf, kg, kr, ks = jax.random.split(key, 5)

    x = jax.random.normal(kx, (B, res_channels, T), dtype=jnp.float32)
    # PyTorch Conv1d weight shapes: (out_channels, in_channels, kernel_size)
    wf = jax.random.normal(kf, (res_channels, res_channels, 2), jnp.float32) * 0.3
    wg = jax.random.normal(kg, (res_channels, res_channels, 2), jnp.float32) * 0.3
    wres = jax.random.normal(kr, (res_channels, res_channels, 1), jnp.float32) * 0.3
    wskip = jax.random.normal(ks, (skip_channels, res_channels, 1), jnp.float32) * 0.3

    res, skip = residual_layer_forward(x, wf, wg, wres, wskip, dilation)
    jax.block_until_ready((res, skip))

    res_ref, skip_ref = residual_layer_reference(x, wf, wg, wres, wskip, dilation)
    assert res.shape == (B, res_channels, T)
    assert skip.shape == (B, skip_channels, T)
    # Tolerances loosened for bf16 MXU operands (f32 accumulation) + approx recip.
    assert jnp.allclose(res, res_ref, rtol=5e-2, atol=7.5e-2), (
        float(jnp.max(jnp.abs(res - res_ref))))
    assert jnp.allclose(skip, skip_ref, rtol=5e-2, atol=7.5e-2), (
        float(jnp.max(jnp.abs(skip - skip_ref))))

    print("KERNEL_OK")
</pallas_src>

<mosaic_0001>
module attributes {stable_mosaic.version = 11 : i64} {
  func.func @_residual_layer_kernel(%arg0: i32, %arg1: i32, %arg2: memref<1x16x32xf32, #tpu.memory_space<vmem>>, %arg3: memref<32x16xbf16, #tpu.memory_space<vmem>>, %arg4: memref<32x16xbf16, #tpu.memory_space<vmem>>, %arg5: memref<48x16xbf16, #tpu.memory_space<vmem>>, %arg6: memref<1x16x32xf32, #tpu.memory_space<vmem>>, %arg7: memref<1x32x32xf32, #tpu.memory_space<vmem>>, %arg8: memref<16x2xf32, #tpu.memory_space<vmem>>) attributes {dimension_semantics = [#tpu.dimension_semantics<parallel>, #tpu.dimension_semantics<arbitrary>], iteration_bounds = array<i64: 2, 1>, scalar_prefetch = 0 : i64, scratch_operands = 1 : i64, tpu.core_type = #tpu.core_type<tc>, window_params = [{transform_indices = @transform_0, window_bounds = array<i64: 1, 16, 32>}, {pipeline_mode = #tpu.pipeline_mode<synchronous>, transform_indices = @transform_1, window_bounds = array<i64: 32, 16>}, {pipeline_mode = #tpu.pipeline_mode<synchronous>, transform_indices = @transform_2, window_bounds = array<i64: 32, 16>}, {pipeline_mode = #tpu.pipeline_mode<synchronous>, transform_indices = @transform_3, window_bounds = array<i64: 48, 16>}, {transform_indices = @transform_4, window_bounds = array<i64: 1, 16, 32>}, {transform_indices = @transform_5, window_bounds = array<i64: 1, 32, 32>}]} {
    %c0_i32 = arith.constant 0 : i32
    %0 = arith.cmpi eq, %arg1, %c0_i32 : i32
    %1 = arith.extui %0 : i1 to i32
    %c0_i32_0 = arith.constant 0 : i32
    %2 = arith.cmpi ne, %1, %c0_i32_0 : i32
    scf.if %2 {
      %cst_22 = arith.constant 0.000000e+00 : f32
      %47 = vector.broadcast %cst_22 : f32 to vector<16x2xf32>
      %c0_23 = arith.constant 0 : index
      %c0_24 = arith.constant 0 : index
      %48 = vector.load %arg8[%c0_23, %c0_24] : memref<16x2xf32, #tpu.memory_space<vmem>>, vector<16x2xf32>
      tpu.vector_store %arg8[%c0_23, %c0_24], %47 {strides = array<i32>} : memref<16x2xf32, #tpu.memory_space<vmem>>, vector<16x2xf32>,
    } else {
    }
    %c0 = arith.constant 0 : index
    %c0_1 = arith.constant 0 : index
    %c0_2 = arith.constant 0 : index
    %3 = vector.load %arg2[%c0, %c0_1, %c0_2] : memref<1x16x32xf32, #tpu.memory_space<vmem>>, vector<1x16x32xf32>
    %4 = vector.shape_cast %3 : vector<1x16x32xf32> to vector<16x32xf32>
    %c0_3 = arith.constant 0 : index
    %c0_4 = arith.constant 0 : index
    %5 = vector.load %arg8[%c0_3, %c0_4] : memref<16x2xf32, #tpu.memory_space<vmem>>, vector<16x2xf32>
    %6 = vector.extract_strided_slice %4 {offsets = [0, 0], sizes = [16, 30], strides = [1, 1]} : vector<16x32xf32> to vector<16x30xf32>
    %7 = tpu.concatenate %5, %6 in 1 : vector<16x2xf32>, vector<16x30xf32> -> vector<16x32xf32>
    %8 = arith.truncf %4 : vector<16x32xf32> to vector<16x32xbf16>
    %9 = arith.truncf %7 : vector<16x32xf32> to vector<16x32xbf16>
    %c0_5 = arith.constant 0 : index
    %c0_6 = arith.constant 0 : index
    %10 = vector.load %arg3[%c0_5, %c0_6] : memref<32x16xbf16, #tpu.memory_space<vmem>>, vector<32x16xbf16>
    %cst = arith.constant dense<0.000000e+00> : vector<32x32xf32>
    %11 = tpu.matmul %10, %9, %cst {dimension_numbers = #tpu.dot_dimension_numbers<[1], [0], [0], [1], [0, 0, 1, 1], [], []>} : vector<32x16xbf16>, vector<16x32xbf16>, vector<32x32xf32> -> vector<32x32xf32>
    %c0_7 = arith.constant 0 : index
    %c0_8 = arith.constant 0 : index
    %12 = vector.load %arg4[%c0_7, %c0_8] : memref<32x16xbf16, #tpu.memory_space<vmem>>, vector<32x16xbf16>
    %cst_9 = arith.constant dense<0.000000e+00> : vector<32x32xf32>
    %13 = tpu.matmul %12, %8, %cst_9 {dimension_numbers = #tpu.dot_dimension_numbers<[1], [0], [0], [1], [0, 0, 1, 1], [], []>} : vector<32x16xbf16>, vector<16x32xbf16>, vector<32x32xf32> -> vector<32x32xf32>
    %14 = arith.addf %11, %13 : vector<32x32xf32>
    %15 = vector.extract_strided_slice %14 {offsets = [0, 0], sizes = [16, 32], strides = [1, 1]} : vector<32x32xf32> to vector<16x32xf32>
    %16 = vector.extract_strided_slice %14 {offsets = [16, 0], sizes = [16, 32], strides = [1, 1]} : vector<32x32xf32> to vector<16x32xf32>
    %cst_10 = arith.constant 0.000000e+00 : f32
    %17 = vector.broadcast %cst_10 : f32 to vector<16x32xf32>
    %18 = arith.subf %17, %16 : vector<16x32xf32>
    %19 = math.exp %18 : vector<16x32xf32>
    %cst_11 = arith.constant 1.000000e+00 : f32
    %20 = vector.broadcast %cst_11 : f32 to vector<16x32xf32>
    %21 = arith.addf %20, %19 : vector<16x32xf32>
    %22 = tpu.reciprocal %21 {approx = true} : vector<16x32xf32> -> vector<16x32xf32>
    %23 = math.tanh %15 : vector<16x32xf32>
    %24 = arith.mulf %23, %22 : vector<16x32xf32>
    %c32_i32 = arith.constant 32 : i32
    %25 = arith.muli %arg1, %c32_i32 : i32
    %26 = tpu.iota {dimensions = array<i32: 1>} : vector<1x32xi32>
    %27 = vector.broadcast %25 : i32 to vector<1x32xi32>
    %28 = arith.addi %27, %26 : vector<1x32xi32>
    %c2_i32 = arith.constant 2 : i32
    %29 = vector.broadcast %c2_i32 : i32 to vector<1x32xi32>
    %30 = arith.cmpi sge, %28, %29 : vector<1x32xi32>
    %cst_12 = arith.constant 0.000000e+00 : f32
    %31 = vector.shape_cast %30 : vector<1x32xi1> to vector<1x32xi1>
    %32 = vector.broadcast %31 : vector<1x32xi1> to vector<16x32xi1>
    %33 = vector.broadcast %cst_12 : f32 to vector<16x32xf32>
    %34 = arith.select %32, %24, %33 : vector<16x32xi1>, vector<16x32xf32>
    %c0_13 = arith.constant 0 : index
    %c0_14 = arith.constant 0 : index
    %35 = vector.load %arg5[%c0_13, %c0_14] : memref<48x16xbf16, #tpu.memory_space<vmem>>, vector<48x16xbf16>
    %36 = arith.truncf %34 : vector<16x32xf32> to vector<16x32xbf16>
    %cst_15 = arith.constant dense<0.000000e+00> : vector<48x32xf32>
    %37 = tpu.matmul %35, %36, %cst_15 {dimension_numbers = #tpu.dot_dimension_numbers<[1], [0], [0], [1], [0, 0, 1, 1], [], []>} : vector<48x16xbf16>, vector<16x32xbf16>, vector<48x32xf32> -> vector<48x32xf32>
    %38 = vector.extract_strided_slice %37 {offsets = [0, 0], sizes = [16, 32], strides = [1, 1]} : vector<48x32xf32> to vector<16x32xf32>
    %39 = arith.addf %4, %38 : vector<16x32xf32>
    %c0_16 = arith.constant 0 : index
    %c0_17 = arith.constant 0 : index
    %c0_18 = arith.constant 0 : index
    %40 = vector.load %arg6[%c0_16, %c0_17, %c0_18] : memref<1x16x32xf32, #tpu.memory_space<vmem>>, vector<1x16x32xf32>
    %41 = vector.shape_cast %40 : vector<1x16x32xf32> to vector<16x32xf32>
    %42 = vector.shape_cast %39 : vector<16x32xf32> to vector<1x16x32xf32>
    tpu.vector_store %arg6[%c0_16, %c0_17, %c0_18], %42 {strides = array<i32>} : memref<1x16x32xf32, #tpu.memory_space<vmem>>, vector<1x16x32xf32>,
    %43 = vector.extract_strided_slice %37 {offsets = [16, 0], sizes = [32, 32], strides = [1, 1]} : vector<48x32xf32> to vector<32x32xf32>
    %c0_19 = arith.constant 0 : index
    %c0_20 = arith.constant 0 : index
    %c0_21 = arith.constant 0 : index
    %44 = vector.load %arg7[%c0_19, %c0_20, %c0_21] : memref<1x32x32xf32, #tpu.memory_space<vmem>>, vector<1x32x32xf32>
    %45 = vector.shape_cast %44 : vector<1x32x32xf32> to vector<32x32xf32>
    %46 = vector.shape_cast %43 : vector<32x32xf32> to vector<1x32x32xf32>
    tpu.vector_store %arg7[%c0_19, %c0_20, %c0_21], %46 {strides = array<i32>} : memref<1x32x32xf32, #tpu.memory_space<vmem>>, vector<1x32x32xf32>,
    return
  }
  func.func @transform_0(%arg0: i32, %arg1: i32) -> (i32, i32, i32) {
    %c0_i32 = arith.constant 0 : i32
    %c0_i32_0 = arith.constant 0 : i32
    return %arg0, %c0_i32, %arg1 : i32, i32, i32
  }
  func.func @transform_1(%arg0: i32, %arg1: i32) -> (i32, i32) {
    %c0_i32 = arith.constant 0 : i32
    %c0_i32_0 = arith.constant 0 : i32
    %c0_i32_1 = arith.constant 0 : i32
    return %c0_i32, %c0_i32_0 : i32, i32
  }
  func.func @transform_2(%arg0: i32, %arg1: i32) -> (i32, i32) {
    %c0_i32 = arith.constant 0 : i32
    %c0_i32_0 = arith.constant 0 : i32
    %c0_i32_1 = arith.constant 0 : i32
    return %c0_i32, %c0_i32_0 : i32, i32
  }
  func.func @transform_3(%arg0: i32, %arg1: i32) -> (i32, i32) {
    %c0_i32 = arith.constant 0 : i32
    %c0_i32_0 = arith.constant 0 : i32
    %c0_i32_1 = arith.constant 0 : i32
    return %c0_i32, %c0_i32_0 : i32, i32
  }
  func.func @transform_4(%arg0: i32, %arg1: i32) -> (i32, i32, i32) {
    %c0_i32 = arith.constant 0 : i32
    %c0_i32_0 = arith.constant 0 : i32
    return %arg0, %c0_i32, %arg1 : i32, i32, i32
  }
  func.func @transform_5(%arg0: i32, %arg1: i32) -> (i32, i32, i32) {
    %c0_i32 = arith.constant 0 : i32
    %c0_i32_0 = arith.constant 0 : i32
    return %arg0, %c0_i32, %arg1 : i32, i32, i32
  }
}

</mosaic_0001>

<llo_original>
// kernel: tpu_custom_call.1
$region0: #{tpu_custom_call.1}
  #allocation0 [shape = 'u32[]', space=smem, size = 0x4, offset = 0x4, fixed_abs, tag = 'smem constant byte address 0x4 - core index']
  #allocation1 [shape = 'u32[72,128]{1,0:T(1,128)}', space=vmem, size = 0x9000, scoped, tag = 'internal scratch']
  #allocation2 [shape = 'f32[16,2]{1,0:T(8,128)}', space=vmem, size = 0x2000, scoped, tag = 'scratch operand']
  %s0 = inlined_call_operand.vmem [shape: f32[2,16,32], index: 0, kind: input, shape index: {}]
  %s1 = inlined_call_operand.vmem [shape: bf16[32,16], index: 1, kind: input, shape index: {}]
  %s2 = inlined_call_operand.vmem [shape: bf16[32,16], index: 2, kind: input, shape index: {}]
  %s3 = inlined_call_operand.vmem [shape: bf16[48,16], index: 3, kind: input, shape index: {}]
  %s4 = inlined_call_operand.hbm [shape: f32[2,16,32], index: 4, kind: output, shape index: {0}]
  %s5 = inlined_call_operand.hbm [shape: f32[2,32,32], index: 5, kind: output, shape index: {1}]
  %6 = xla_tuple %s4, %s5
  %s7 = sld [smem:[#allocation0]]
  $region61: #{tpu_custom_call.1} parent=0
    _
  %s9 = ssub.s32 1, %s7
  %s10 = scalar_select 0, %s9, %s7
  $region1: #{tpu_custom_call.1} parent=0
    #allocation3 [shape = 'u8[16384]{0}', space=vmem, size = 0x4000, scoped, tag = 'output window, operand 0']
    #allocation4 [shape = 's32[2]{0}', space=sflag, size = 0x8, scoped, tag = 'scoped memory for tpu_custom_call.1']
    #allocation5 [shape = 'u8[32768]{0}', space=vmem, size = 0x8000, scoped, tag = 'output window, operand 1']
    #allocation6 [shape = 's32[2]{0}', space=sflag, size = 0x8, scoped, tag = 'scoped memory for tpu_custom_call.1']
    %11 = vsyncpa [#allocation4], 0
    %s12 = scalar_lea.sflag [#allocation4], 1
    %13 = vsyncpa %s12, 0
    %14 = vsyncpa [#allocation6], 0
    %s15 = scalar_lea.sflag [#allocation6], 1
    %16 = vsyncpa %s15, 0
    loop: start=0, step=1, limit=4
    $region2: #{tpu_custom_call.1} parent=1 // loop_pre_header
      _
    $region3: #{tpu_custom_call.1} parent=1 // loop_header
      %s18 = sphi 0, %s22
      %p19 = scmp.ge.s32.totalorder %s18, 4
      %s25 = sphi 0, %s37
      %s26 = sphi 0, %s33
      %s27 = sphi 0, %s25
      %s28 = sphi 0, %s26
      %s29 = sphi 0, %s27
      %s30 = sphi 0, %s28
      %s42 = sphi 0, %s44
      %s45 = sphi 0, %s42
      %s46 = sphi 0, %s45
      %s62 = sphi 0, %s46
      %s66 = sphi 0, %s66
      %s68 = sphi 0, %s66
      %s69 = sphi 0, %s68
      %s83 = sphi 0, %s69
      %s87 = sphi 0, %s87
      %s89 = sphi 0, %s87
      %s90 = sphi 0, %s89
      %s104 = sphi 0, %s90
      %s108 = sphi 0, %s108
      %s110 = sphi 0, %s108
      %s111 = sphi 0, %s110
      %s125 = sphi 0, %s111
      %s133 = sphi 0, %s135
      %s136 = sphi 0, %s133
      %s137 = sphi 0, %s136
      %s153 = sphi 0, %s137
      %s161 = sphi 0, %s163
      %s164 = sphi 0, %s161
      %s165 = sphi 0, %s164
      %s181 = sphi 0, %s165
    $region4: #{tpu_custom_call.1} parent=1 // loop_header_branch
      %21 = sbr.rel (%p19) target = $region8
    $region5: #{tpu_custom_call.1} parent=1 // loop_body
      %s23 = ssub.s32 %s18, 1
      %s24 = ssub.s32 %s18, 2
      %s31 = sadd.s32 1, %s26
      %p32 = scmp.ge.s32.totalorder %s31, 1
      %s33 = scalar_select %p32, 0, %s31
      %s34 = sadd.s32 1, %s25
      %s35 = scalar_select %p32, %s34, %s25
      %p36 = scmp.ge.s32.totalorder %s35, 2
      %s37 = scalar_select %p36, 0, %s35
      %s38 = ssub.s32 %s25, %s37
      %s39 = ssub.s32 %s26, %s33
      %s40 = sor.u32 %s38, %s39
      %p41 = scmp.eq.s32.totalorder %s40, 0
      %s43 = sadd.s32 %s42, 1
      %s44 = scalar_select %p41, %s42, %s43
      %p47 = pneg %p41
      %p48 = scmp.eq.s32.totalorder %s18, 1
      %p49 = por %p47, %p48
      %p50 = scmp.ne.s32.totalorder %s42, %s45
      %p51 = scmp.eq.s32.totalorder %s18, 0
      %p52 = por %p50, %p51
      %p53 = scmp.ne.s32.totalorder %s42, %s45
      %p54 = scmp.eq.s32.totalorder %s23, 1
      %p55 = por %p53, %p54
      %p56 = scmp.ne.s32.totalorder %s45, %s46
      %p57 = scmp.eq.s32.totalorder %s23, 0
      %p58 = por %p56, %p57
      %p59 = scmp.ne.s32.totalorder %s45, %s46
      %p60 = scmp.eq.s32.totalorder %s24, 1
      %p61 = por %p59, %p60
      %p63 = scmp.ne.s32.totalorder %s46, %s62
      %p64 = scmp.eq.s32.totalorder %s24, 0
      %p65 = por %p63, %p64
      %s67 = sadd.s32 %s66, 1
      %p70 = scmp.eq.s32.totalorder %s18, 1
      %p71 = scmp.ne.s32.totalorder %s66, %s68
      %p72 = scmp.eq.s32.totalorder %s18, 0
      %p73 = por %p71, %p72
      %p74 = scmp.ne.s32.totalorder %s66, %s68
      %p75 = scmp.eq.s32.totalorder %s23, 1
      %p76 = por %p74, %p75
      %p77 = scmp.ne.s32.totalorder %s68, %s69
      %p78 = scmp.eq.s32.totalorder %s23, 0
      %p79 = por %p77, %p78
      %p80 = scmp.ne.s32.totalorder %s68, %s69
      %p81 = scmp.eq.s32.totalorder %s24, 1
      %p82 = por %p80, %p81
      %p84 = scmp.ne.s32.totalorder %s69, %s83
      %p85 = scmp.eq.s32.totalorder %s24, 0
      %p86 = por %p84, %p85
      %s88 = sadd.s32 %s87, 1
      %p91 = scmp.eq.s32.totalorder %s18, 1
      %p92 = scmp.ne.s32.totalorder %s87, %s89
      %p93 = scmp.eq.s32.totalorder %s18, 0
      %p94 = por %p92, %p93
      %p95 = scmp.ne.s32.totalorder %s87, %s89
      %p96 = scmp.eq.s32.totalorder %s23, 1
      %p97 = por %p95, %p96
      %p98 = scmp.ne.s32.totalorder %s89, %s90
      %p99 = scmp.eq.s32.totalorder %s23, 0
      %p100 = por %p98, %p99
      %p101 = scmp.ne.s32.totalorder %s89, %s90
      %p102 = scmp.eq.s32.totalorder %s24, 1
      %p103 = por %p101, %p102
      %p105 = scmp.ne.s32.totalorder %s90, %s104
      %p106 = scmp.eq.s32.totalorder %s24, 0
      %p107 = por %p105, %p106
      %s109 = sadd.s32 %s108, 1
      %p112 = scmp.eq.s32.totalorder %s18, 1
      %p113 = scmp.ne.s32.totalorder %s108, %s110
      %p114 = scmp.eq.s32.totalorder %s18, 0
      %p115 = por %p113, %p114
      %p116 = scmp.ne.s32.totalorder %s108, %s110
      %p117 = scmp.eq.s32.totalorder %s23, 1
      %p118 = por %p116, %p117
      %p119 = scmp.ne.s32.totalorder %s110, %s111
      %p120 = scmp.eq.s32.totalorder %s23, 0
      %p121 = por %p119, %p120
      %p122 = scmp.ne.s32.totalorder %s110, %s111
      %p123 = scmp.eq.s32.totalorder %s24, 1
      %p124 = por %p122, %p123
      %p126 = scmp.ne.s32.totalorder %s111, %s125
      %p127 = scmp.eq.s32.totalorder %s24, 0
      %p128 = por %p126, %p127
      %s129 = ssub.s32 %s25, %s37
      %s130 = ssub.s32 %s26, %s33
      %s131 = sor.u32 %s129, %s130
      %p132 = scmp.eq.s32.totalorder %s131, 0
      %s134 = sadd.s32 %s133, 1
      %s135 = scalar_select %p132, %s133, %s134
      %p138 = pneg %p132
      %p139 = scmp.eq.s32.totalorder %s18, 1
      %p140 = por %p138, %p139
      %p141 = scmp.ne.s32.totalorder %s133, %s136
      %p142 = scmp.eq.s32.totalorder %s18, 0
      %p143 = por %p141, %p142
      %p144 = scmp.ne.s32.totalorder %s133, %s136
      %p145 = scmp.eq.s32.totalorder %s23, 1
      %p146 = por %p144, %p145
      %p147 = scmp.ne.s32.totalorder %s136, %s137
      %p148 = scmp.eq.s32.totalorder %s23, 0
      %p149 = por %p147, %p148
      %p150 = scmp.ne.s32.totalorder %s136, %s137
      %p151 = scmp.eq.s32.totalorder %s24, 1
      %p152 = por %p150, %p151
      %p154 = scmp.ne.s32.totalorder %s137, %s153
      %p155 = scmp.eq.s32.totalorder %s24, 0
      %p156 = por %p154, %p155
      %s157 = ssub.s32 %s25, %s37
      %s158 = ssub.s32 %s26, %s33
      %s159 = sor.u32 %s157, %s158
      %p160 = scmp.eq.s32.totalorder %s159, 0
      %s162 = sadd.s32 %s161, 1
      %s163 = scalar_select %p160, %s161, %s162
      %p166 = pneg %p160
      %p167 = scmp.eq.s32.totalorder %s18, 1
      %p168 = por %p166, %p167
      %p169 = scmp.ne.s32.totalorder %s161, %s164
      %p170 = scmp.eq.s32.totalorder %s18, 0
      %p171 = por %p169, %p170
      %p172 = scmp.ne.s32.totalorder %s161, %s164
      %p173 = scmp.eq.s32.totalorder %s23, 1
      %p174 = por %p172, %p173
      %p175 = scmp.ne.s32.totalorder %s164, %s165
      %p176 = scmp.eq.s32.totalorder %s23, 0
      %p177 = por %p175, %p176
      %p178 = scmp.ne.s32.totalorder %s164, %s165
      %p179 = scmp.eq.s32.totalorder %s24, 1
      %p180 = por %p178, %p179
      %p182 = scmp.ne.s32.totalorder %s165, %s181
      %p183 = scmp.eq.s32.totalorder %s24, 0
      %p184 = por %p182, %p183
      %p185 = scmp.le.s32.totalorder 1, %s18
      %p186 = scmp.lt.s32.totalorder %s18, 3
      %p187 = pnand %p185, %p186
      %p188 = pneg %p187
      // Predicated region
      $region9: #{tpu_custom_call.1} parent=5 // pred_check
        _
      $region10: #{tpu_custom_call.1} parent=5 // pred_check_branch
        %190 = sbr.rel (%p187) target = $region12
      $region11: #{tpu_custom_call.1} parent=5 // pred_region
        %s191 = ssub.s32 %s18, 1
        // Predicated region
        $region13: #{tpu_custom_call.1} parent=11 // pred_check
          %p192 = pneg %p79
        $region14: #{tpu_custom_call.1} parent=11 // pred_check_branch
          %194 = sbr.rel (%p192) target = $region16
        $region15: #{tpu_custom_call.1} parent=11 // pred_region
          _
        $region16: #{tpu_custom_call.1} parent=11 // pred_fallthru
          _
        // Predicated region
        $region17: #{tpu_custom_call.1} parent=11 // pred_check
          %p195 = pneg %p100
        $region18: #{tpu_custom_call.1} parent=11 // pred_check_branch
          %197 = sbr.rel (%p195) target = $region20
        $region19: #{tpu_custom_call.1} parent=11 // pred_region
          _
        $region20: #{tpu_custom_call.1} parent=11 // pred_fallthru
          _
        // Predicated region
        $region21: #{tpu_custom_call.1} parent=11 // pred_check
          %p198 = pneg %p121
        $region22: #{tpu_custom_call.1} parent=11 // pred_check_branch
          %200 = sbr.rel (%p198) target = $region24
        $region23: #{tpu_custom_call.1} parent=11 // pred_region
          _
        $region24: #{tpu_custom_call.1} parent=11 // pred_fallthru
          _
      $region12: #{tpu_custom_call.1} parent=5 // pred_fallthru
        _
      %p201 = scmp.lt.s32.totalorder %s18, 2
      // Predicated region
      $region25: #{tpu_custom_call.1} parent=5 // pred_check
        %p202 = pneg %p201
      $region26: #{tpu_custom_call.1} parent=5 // pred_check_branch
        %204 = sbr.rel (%p202) target = $region28
      $region27: #{tpu_custom_call.1} parent=5 // pred_region
        // Predicated region
        $region29: #{tpu_custom_call.1} parent=27 // pred_check
          %p205 = pneg %p52
        $region30: #{tpu_custom_call.1} parent=27 // pred_check_branch
          %207 = sbr.rel (%p205) target = $region32
        $region31: #{tpu_custom_call.1} parent=27 // pred_region
          %p208 = scmp.lt.s32.totalorder %s25, 1
          %s209 = scalar_select %p208, %s25, 1
          %p210 = scmp.lt.s32.totalorder %s26, 0
          %s211 = scalar_select %p210, %s26, 0
          %s212 = smul.addr %s209, 2
          %s213 = sadd.s32 %s211, %s212
          %s214 = smul.addr %s213, 8
          %s215 = scalar_lea.vmem %s0, %s214
        $region32: #{tpu_custom_call.1} parent=27 // pred_fallthru
          _
      $region28: #{tpu_custom_call.1} parent=5 // pred_fallthru
        _
      %p216 = scmp.le.s32.totalorder 1, %s18
      %p217 = scmp.lt.s32.totalorder %s18, 3
      %p218 = pnand %p216, %p217
      %p219 = pneg %p218
      // Predicated region
      $region33: #{tpu_custom_call.1} parent=5 // pred_check
        _
      $region34: #{tpu_custom_call.1} parent=5 // pred_check_branch
        %221 = sbr.rel (%p218) target = $region36
      $region35: #{tpu_custom_call.1} parent=5 // pred_region
        %s222 = ssub.s32 %s18, 1
        %p223 = scmp.lt.s32.totalorder %s27, 1
        %s224 = scalar_select %p223, %s27, 1
        %p225 = scmp.lt.s32.totalorder %s28, 0
        %s226 = scalar_select %p225, %s28, 0
        %s227 = smul.addr %s224, 2
        %s228 = sadd.s32 %s226, %s227
        %s229 = smul.addr %s228, 8
        %s230 = scalar_lea.vmem %s0, %s229
        %p231 = pneg %p58
        %p232 = pneg %p55
        %p233 = pneg %p79
        %p234 = pneg %p76
        %p235 = pneg %p100
        %p236 = pneg %p97
        %p237 = pneg %p121
        %p238 = pneg %p118
        %p239 = pneg %p149
        %p240 = pneg %p146
        %s241 = sand.u32 %s136, 1
        %s242 = scalar_lea.sflag [#allocation4], %s241
        %s243 = sand.u32 %s136, 1
        %s244 = smul.addr %s243, 16
        %s245 = scalar_lea.vmem [#allocation3], %s244
        %p246 = pneg %p177
        %p247 = pneg %p174
        %s248 = sand.u32 %s164, 1
        %s249 = scalar_lea.sflag [#allocation6], %s248
        %s250 = sand.u32 %s164, 1
        %s251 = smul.addr %s250, 32
        %s252 = scalar_lea.vmem [#allocation5], %s251
        %p253 = scmp.lt.s32.totalorder %s27, 1
        %s254 = scalar_select %p253, %s27, 1
        %p255 = scmp.lt.s32.totalorder %s28, 0
        %s256 = scalar_select %p255, %s28, 0
        %s257 = smul.addr %s254, 2
        %s258 = sadd.s32 %s256, %s257
        %s259 = smul.addr %s258, 8
        %s260 = scalar_lea.vmem %s0, %s259
        %p262 = scmp.eq.s32.totalorder %s28, 0
        // Predicated region
        $region37: #{tpu_custom_call.1} parent=35 // pred_check
          %p263 = pneg %p262
        $region38: #{tpu_custom_call.1} parent=35 // pred_check_branch
          %265 = sbr.rel (%p263) target = $region40
        $region39: #{tpu_custom_call.1} parent=35 // pred_region
          %vm266 = vcmask 15360
          %267 = vst.msk [vmem:[#allocation2] sm:$0xff] %vm266, 0.0
          %268 = vst.msk [vmem:[#allocation2 + $0x8] sm:$0xff] %vm266, 0.0
        $region40: #{tpu_custom_call.1} parent=35 // pred_fallthru
          _
        %v269 = vld [vmem:[%s260] sm:$0xff]
        %v270 = vld [vmem:[%s260 + $0x8] sm:$0xff]
        %v271 = vld [vmem:[#allocation2] sm:$0xff]
        %v272 = vld [vmem:[#allocation2 + $0x8] sm:$0xff]
        %275 = vrot.lane.b32.xlu0 %v269, 2
        %v276 = vpop.permute.xlu0 %275
        %277 = vrot.lane.b32.xlu0 %v270, 2
        %v278 = vpop.permute.xlu0 %277
        %vm281 = vcmask 15360
        %v282 = vsel %vm281, %v271, %v276
        %v283 = vsel %vm281, %v272, %v278
        %v284 = vpack.c.bf16 %v270, %v269
        %v285 = vpack.c.bf16 %v283, %v282
        %v286 = vld [vmem:[%s1] sm:$0xf]
        %v287 = vld [vmem:[%s1 + $0x4] sm:$0xf]
        %v288 = vld [vmem:[%s1 + $0x8] sm:$0xf]
        %v289 = vld [vmem:[%s1 + $0xc] sm:$0xf]
        %v290 = vld [vmem:[%s2] sm:$0xf]
        %v291 = vld [vmem:[%s2 + $0x4] sm:$0xf]
        %v292 = vld [vmem:[%s2 + $0x8] sm:$0xf]
        %v293 = vld [vmem:[%s2 + $0xc] sm:$0xf]
        %v298 = vunpack.c.l.b16 %v290
        %v299 = vunpack.c.l.b16 %v291
        %v300 = vunpack.c.l.b16 %v292
        %v301 = vunpack.c.l.b16 %v293
        %v302 = vpack.c.b16 %v299, %v298
        %v303 = vpack.c.b16 %v301, %v300
        %vm304 = vcmask 130048
        %v306 = vsel %vm304, %v302, 0
        %v309 = vsel %vm304, %v303, 0
        %311 = vmatpush.bf16.msra.mxu0 0
        %312 = vmatpush.bf16.msra.mxu0 0
        %313 = vmatpush.bf16.msra.mxu0 0
        %314 = vmatpush.bf16.msra.mxu0 0
        %315 = vmatpush.bf16.msra.mxu0 0
        %316 = vmatpush.bf16.msra.mxu0 0
        %317 = vmatpush.bf16.msra.mxu0 0
        %318 = vmatpush.bf16.msra.mxu0 %v284
        %319 = vmatmul.bf16.gmra.mxu0 %v306
        %v320 = vpop.f32.mrf.mxu0
        %v321 = vadd.f32 0.0, %v320
        %v322 = vpop.f32.mrf.mxu0
        %v323 = vadd.f32 0.0, %v322
        %324 = vmatmul.bf16.gmra.mxu0 %v309
        %v325 = vpop.f32.mrf.mxu0
        %v326 = vadd.f32 0.0, %v325
        %v327 = vpop.f32.mrf.mxu0
        %v328 = vadd.f32 0.0, %v327
        %329 = vdwg.mxu0
        %v334 = vunpack.c.l.b16 %v286
        %v335 = vunpack.c.l.b16 %v287
        %v336 = vunpack.c.l.b16 %v288
        %v337 = vunpack.c.l.b16 %v289
        %v338 = vpack.c.b16 %v335, %v334
        %v339 = vpack.c.b16 %v337, %v336
        %v341 = vsel %vm304, %v338, 0
        %v344 = vsel %vm304, %v339, 0
        %346 = vmatpush.bf16.msra.mxu0 0
        %347 = vmatpush.bf16.msra.mxu0 0
        %348 = vmatpush.bf16.msra.mxu0 0
        %349 = vmatpush.bf16.msra.mxu0 0
        %350 = vmatpush.bf16.msra.mxu0 0
        %351 = vmatpush.bf16.msra.mxu0 0
        %352 = vmatpush.bf16.msra.mxu0 0
        %353 = vmatpush.bf16.msra.mxu0 %v285
        %354 = vmatmul.bf16.gmra.mxu0 %v341
        %v355 = vpop.f32.mrf.mxu0
        %v356 = vadd.f32 %v321, %v355
        %v357 = vpop.f32.mrf.mxu0
        %v358 = vadd.f32 %v323, %v357
        %359 = vmatmul.bf16.gmra.mxu0 %v344
        %v360 = vpop.f32.mrf.mxu0
        %v361 = vadd.f32 %v326, %v360
        %v362 = vpop.f32.mrf.mxu0
        %v363 = vadd.f32 %v328, %v362
        %364 = vdwg.mxu0
        %v365 = vsub.f32 0.0, %v361
        %v366 = vsub.f32 0.0, %v363
        %v367 = vmul.f32 %v365, 1.442695
        %v368 = vpow.pop %v367
        %v369 = vmul.f32 %v366, 1.442695
        %v370 = vpow.pop %v369
        %v371 = vadd.f32 %v368, 1.0
        %v372 = vadd.f32 %v370, 1.0
        %v373 = vrcp.pop %v371
        %v374 = vrcp.pop %v372
        %v375 = vtanh.pop %v356
        %v376 = vtanh.pop %v358
        %v377 = vmul.f32 %v375, %v373
        %v378 = vmul.f32 %v376, %v374
        %s379 = smul.u32 %s28, 32
        %v380 = vlaneseq
        %v381 = vand.u32 %v380, 127
        %v382 = vstv %s379
        %v383 = vadd.s32 %v382, %v381
        %vm384 = vcmp.ge.s32.totalorder %v383, 2
        %v385 = vsel %vm384, 1, 0
        %vm386 = vcmp.eq.s32.totalorder %v385, 1
        %v387 = vsel %vm386, %v377, 0.0
        %v388 = vsel %vm386, %v378, 0.0
        %v389 = vld [vmem:[%s3] sm:$0xf]
        %v390 = vld [vmem:[%s3 + $0x4] sm:$0xf]
        %v391 = vld [vmem:[%s3 + $0x8] sm:$0xf]
        %v392 = vld [vmem:[%s3 + $0xc] sm:$0xf]
        %v393 = vld [vmem:[%s3 + $0x10] sm:$0xf]
        %v394 = vld [vmem:[%s3 + $0x14] sm:$0xf]
        %v395 = vpack.c.bf16 %v388, %v387
        %v402 = vunpack.c.l.b16 %v389
        %v403 = vunpack.c.l.b16 %v390
        %v404 = vunpack.c.l.b16 %v391
        %v405 = vunpack.c.l.b16 %v392
        %v406 = vunpack.c.l.b16 %v393
        %v407 = vunpack.c.l.b16 %v394
        %v408 = vpack.c.b16 %v403, %v402
        %v409 = vpack.c.b16 %v405, %v404
        %v410 = vpack.c.b16 %v407, %v406
        %v412 = vsel %vm304, %v408, 0
        %v415 = vsel %vm304, %v409, 0
        %v418 = vsel %vm304, %v410, 0
        %420 = vmatpush.bf16.msra.mxu0 0
        %421 = vmatpush.bf16.msra.mxu0 0
        %422 = vmatpush.bf16.msra.mxu0 0
        %423 = vmatpush.bf16.msra.mxu0 0
        %424 = vmatpush.bf16.msra.mxu0 0
        %425 = vmatpush.bf16.msra.mxu0 0
        %426 = vmatpush.bf16.msra.mxu0 0
        %427 = vmatpush.bf16.msra.mxu0 %v395
        %428 = vmatmul.bf16.gmra.mxu0 %v412
        %v429 = vpop.f32.mrf.mxu0
        %v430 = vadd.f32 0.0, %v429
        %v431 = vpop.f32.mrf.mxu0
        %v432 = vadd.f32 0.0, %v431
        %433 = vmatmul.bf16.gmra.mxu0 %v415
        %v434 = vpop.f32.mrf.mxu0
        %v435 = vadd.f32 0.0, %v434
        %v436 = vpop.f32.mrf.mxu0
        %v437 = vadd.f32 0.0, %v436
        %438 = vmatmul.bf16.gmra.mxu0 %v418
        %v439 = vpop.f32.mrf.mxu0
        %v440 = vadd.f32 0.0, %v439
        %v441 = vpop.f32.mrf.mxu0
        %v442 = vadd.f32 0.0, %v441
        %443 = vdwg.mxu0
        %v444 = vadd.f32 %v269, %v430
        %v445 = vadd.f32 %v270, %v432
        %vm446 = vcmask 261120
        %447 = vst.msk [vmem:[%s245] sm:$0xff] %vm446, %v444
        %448 = vst.msk [vmem:[%s245 + $0x8] sm:$0xff] %vm446, %v445
        %449 = vst.msk [vmem:[%s252] sm:$0xff] %vm446, %v435
        %450 = vst.msk [vmem:[%s252 + $0x8] sm:$0xff] %vm446, %v437
        %451 = vst.msk [vmem:[%s252 + $0x10] sm:$0xff] %vm446, %v440
        %452 = vst.msk [vmem:[%s252 + $0x18] sm:$0xff] %vm446, %v442
        %s453 = sand.u32 %s136, 1
        %s454 = scalar_lea.sflag [#allocation4], %s453
        %s455 = sand.u32 %s136, 1
        %s456 = smul.addr %s455, 16
        %s457 = scalar_lea.vmem [#allocation3], %s456
        %s458 = sand.u32 %s164, 1
        %s459 = scalar_lea.sflag [#allocation6], %s458
        %s460 = sand.u32 %s164, 1
        %s461 = smul.addr %s460, 32
        %s462 = scalar_lea.vmem [#allocation5], %s461
        // Predicated region
        $region41: #{tpu_custom_call.1} parent=35 // pred_check
          %p463 = pneg %p146
        $region42: #{tpu_custom_call.1} parent=35 // pred_check_branch
          %465 = sbr.rel (%p463) target = $region44
        $region43: #{tpu_custom_call.1} parent=35 // pred_region
          %467 = vsyncadd %s454, 0
          %s468 = smul.addr %s27, 2
          %s469 = sadd.s32 %s28, %s468
          %s470 = smul.addr %s469, 8
          %s471 = scalar_lea.hbm %s4, %s470
          %s472 = sshll.u32 %s457, 4
          %s473 = int_to_ptr.vmem [resolvable:$true] %s472
          %s474 = sshll.u32 %s471, 4
          %s475 = int_to_ptr.hbm [resolvable:$true] %s474
          %480 = dma.vmem_to_hbm [thread:$0]  %s473, 256, %s475, %s454, 128, 128, 8
        $region44: #{tpu_custom_call.1} parent=35 // pred_fallthru
          _
        // Predicated region
        $region45: #{tpu_custom_call.1} parent=35 // pred_check
          %p481 = pneg %p174
        $region46: #{tpu_custom_call.1} parent=35 // pred_check_branch
          %483 = sbr.rel (%p481) target = $region48
        $region47: #{tpu_custom_call.1} parent=35 // pred_region
          %485 = vsyncadd %s459, 0
          %s486 = smul.addr %s27, 4
          %s487 = sadd.s32 %s28, %s486
          %s488 = smul.addr %s487, 8
          %s489 = scalar_lea.hbm %s5, %s488
          %s490 = sshll.u32 %s462, 4
          %s491 = int_to_ptr.vmem [resolvable:$true] %s490
          %s492 = sshll.u32 %s489, 4
          %s493 = int_to_ptr.hbm [resolvable:$true] %s492
          %498 = dma.vmem_to_hbm [thread:$0]  %s491, 512, %s493, %s459, 128, 128, 8
        $region48: #{tpu_custom_call.1} parent=35 // pred_fallthru
          _
      $region36: #{tpu_custom_call.1} parent=5 // pred_fallthru
        _
      %p499 = scmp.le.s32.totalorder 2, %s18
      // Predicated region
      $region49: #{tpu_custom_call.1} parent=5 // pred_check
        %p500 = pneg %p499
      $region50: #{tpu_custom_call.1} parent=5 // pred_check_branch
        %502 = sbr.rel (%p500) target = $region52
      $region51: #{tpu_custom_call.1} parent=5 // pred_region
        %s503 = ssub.s32 %s18, 2
        // Predicated region
        $region53: #{tpu_custom_call.1} parent=51 // pred_check
          %p504 = pneg %p152
        $region54: #{tpu_custom_call.1} parent=51 // pred_check_branch
          %506 = sbr.rel (%p504) target = $region56
        $region55: #{tpu_custom_call.1} parent=51 // pred_region
          %s507 = sand.u32 %s137, 1
          %s508 = scalar_lea.sflag [#allocation4], %s507
          %s509 = sand.u32 %s137, 1
          %s510 = smul.addr %s509, 16
          %s511 = scalar_lea.vmem [#allocation3], %s510
          %513 = dma.done %s508, 256
        $region56: #{tpu_custom_call.1} parent=51 // pred_fallthru
          _
        // Predicated region
        $region57: #{tpu_custom_call.1} parent=51 // pred_check
          %p514 = pneg %p180
        $region58: #{tpu_custom_call.1} parent=51 // pred_check_branch
          %516 = sbr.rel (%p514) target = $region60
        $region59: #{tpu_custom_call.1} parent=51 // pred_region
          %s517 = sand.u32 %s165, 1
          %s518 = scalar_lea.sflag [#allocation6], %s517
          %s519 = sand.u32 %s165, 1
          %s520 = smul.addr %s519, 32
          %s521 = scalar_lea.vmem [#allocation5], %s520
          %523 = dma.done %s518, 512
        $region60: #{tpu_custom_call.1} parent=51 // pred_fallthru
          _
      $region52: #{tpu_custom_call.1} parent=5 // pred_fallthru
        _
    $region6: #{tpu_custom_call.1} parent=1 // loop_footer
      %s22 = sadd.s32 1, %s18
    $region7: #{tpu_custom_call.1} parent=1 // loop_footer_branch
      %17 = sbr.rel target = $region3
    $region8: #{tpu_custom_call.1} parent=1 // loop_exit
      _
    %524 = vsyncpa [#allocation4], 1
    %s525 = scalar_lea.sflag [#allocation4], 1
    %526 = vsyncpa %s525, 1
    %527 = vsyncpa [#allocation6], 1
    %s528 = scalar_lea.sflag [#allocation6], 1
    %529 = vsyncpa %s528, 1

</llo_original>
